<compile_context>
chip_gen: v7x
topology: tpu7x:2x2x1
jax: 0.10.0
libtpu: 0.0.40
codegen_flags: <defaults>
</compile_context>

<pallas_src>
import functools

import jax
import jax.numpy as jnp
import numpy as np
from jax.experimental import pallas as pl
from jax.experimental.pallas import tpu as pltpu


def _decoder_step(loc, emb_tbl_ref, hist_ref,
                  w_emb_ref, w_ctx_ref, w_h_ref, b_ref,
                  wfc_h_ref, wfc_c_ref, bfc_ref,
                  ctx, h, c):
    """One LSTM + dot-attention + fc step on (1, H) state rows.  Returns padded score."""
    H = h.shape[1]
    n_loc = emb_tbl_ref.shape[0]

    # Embedding gather: dynamic sublane slice of the VMEM table.  Clamp first --
    # VMEM dynamic loads have no runtime OOB protection.
    loc = jnp.minimum(jnp.maximum(loc, 0), n_loc - 1)
    emb = emb_tbl_ref[pl.ds(loc, 1), :]                          # (1, H)

    # LSTM gates fused into one lane-dense (1, 4H) accumulator; gate order (i, f, g, o)
    # matches PyTorch nn.LSTM.
    # TODO(synk): merging these three matmuls into a single (1,3H)x(3H,4H) (and the two
    # fc matmuls below into one) needs a lane-axis concat/relayout of sub-128-wide rows;
    # kept as summed matmuls to stay on well-trodden Mosaic lowerings.
    gates = (jnp.dot(emb, w_emb_ref[...], preferred_element_type=jnp.float32)
             + jnp.dot(ctx, w_ctx_ref[...], preferred_element_type=jnp.float32)
             + jnp.dot(h, w_h_ref[...], preferred_element_type=jnp.float32)
             + b_ref[...])                                       # (1, 4H)

    # Full-vreg activations: one sigmoid + one tanh over the whole (1, 4H) row, then
    # static lane slices (instead of four sub-vreg EUP pushes).
    sig = jax.nn.sigmoid(gates)
    tah = jnp.tanh(gates)
    i_g = sig[:, 0:H]
    f_g = sig[:, H:2 * H]
    g_g = tah[:, 2 * H:3 * H]
    o_g = sig[:, 3 * H:4 * H]
    c_new = f_g * c + i_g * g_g
    h_new = o_g * jnp.tanh(c_new)

    # Dot-product attention: energies as one MXU contraction, softmax over a lane-major
    # (1, S) row, normalization via approximate reciprocal (EUP slot).
    hist = hist_ref[...]                                         # (S, H)
    e = jax.lax.dot_general(h_new, hist, (((1,), (1,)), ((), ())),
                            preferred_element_type=jnp.float32)  # (1, S)
    e = e - jnp.max(e, axis=1, keepdims=True)
    w = jnp.exp(e)
    w = w * pl.reciprocal(jnp.sum(w, axis=1, keepdims=True), approx=True)
    context = jnp.dot(w, hist, preferred_element_type=jnp.float32)   # (1, H)

    # Final projection (dropout == identity in eval mode) + log-softmax over the
    # 128-lane-padded logits (padding bias is -1e30, so padded lanes contribute 0).
    y = (jnp.dot(h_new, wfc_h_ref[...], preferred_element_type=jnp.float32)
         + jnp.dot(context, wfc_c_ref[...], preferred_element_type=jnp.float32)
         + bfc_ref[...])                                         # (1, L_pad)
    z = y - jnp.max(y, axis=1, keepdims=True)
    lse = jnp.log(jnp.sum(jnp.exp(z), axis=1, keepdims=True))
    score = z - lse
    return score, context, h_new, c_new


def decoder_fused_kernel(locs_ref, emb_tbl_ref, ctx0_ref, h0_ref, c0_ref, hist_ref,
                         w_emb_ref, w_ctx_ref, w_h_ref, b_ref,
                         wfc_h_ref, wfc_c_ref, bfc_ref,
                         scores_ref, state_ref):
    """Runs T decoder steps in one call: weights stay VMEM-resident, state in registers."""
    n_steps = scores_ref.shape[0]

    def step(t, carry):
        ctx, h, c = carry
        score, context, h_new, c_new = _decoder_step(
            locs_ref[t], emb_tbl_ref, hist_ref,
            w_emb_ref, w_ctx_ref, w_h_ref, b_ref,
            wfc_h_ref, wfc_c_ref, bfc_ref,
            ctx, h, c)
        scores_ref[pl.ds(t, 1), :] = score                       # lane-dense row store
        return (context, h_new, c_new)

    ctx, h, c = jax.lax.fori_loop(
        0, n_steps, step,
        (ctx0_ref[...], h0_ref[...], c0_ref[...]),
        unroll=True)

    # Consolidated state output: rows = [context, h, c].
    state_ref[0:1, :] = ctx
    state_ref[1:2, :] = h
    state_ref[2:3, :] = c


def pack_params(params, lane_multiple=128):
    """One-time weight packing / padding (done at init, NOT per decoder step)."""
    H = params["hidden_size"]
    L = params["loc_size"]
    L_pad = ((L + lane_multiple - 1) // lane_multiple) * lane_multiple
    w_ih = jnp.asarray(params["w_ih"], jnp.float32)              # (4H, 2H), cols [emb|ctx]
    w_hh = jnp.asarray(params["w_hh"], jnp.float32)              # (4H, H)
    w_fc = jnp.asarray(params["w_fc"], jnp.float32)              # (L, 2H), cols [h|ctx]
    b_fc = jnp.asarray(params["b_fc"], jnp.float32)              # (L,)

    wfc_h = jnp.zeros((H, L_pad), jnp.float32).at[:, :L].set(w_fc[:, :H].T)
    wfc_c = jnp.zeros((H, L_pad), jnp.float32).at[:, :L].set(w_fc[:, H:].T)
    bfc = jnp.full((1, L_pad), -1e30, jnp.float32).at[0, :L].set(b_fc)

    return {
        "embedding": jnp.asarray(params["embedding"], jnp.float32),      # (L, H)
        "w_emb_T": w_ih[:, :H].T,                                        # (H, 4H)
        "w_ctx_T": w_ih[:, H:].T,                                        # (H, 4H)
        "w_h_T": w_hh.T,                                                 # (H, 4H)
        "b": (jnp.asarray(params["b_ih"]) + jnp.asarray(params["b_hh"])
              ).astype(jnp.float32).reshape(1, 4 * H),                   # (1, 4H)
        "w_fc_h_T": wfc_h,                                               # (H, L_pad)
        "w_fc_c_T": wfc_c,                                               # (H, L_pad)
        "b_fc": bfc,                                                     # (1, L_pad)
    }


def _call_fused(locs, last_context, h2, c2, hidden_history, packed):
    """Single pallas_call running len(locs) decoder steps."""
    H = packed["w_h_T"].shape[0]
    L_pad = packed["b_fc"].shape[1]
    T = locs.shape[0]

    ctx0 = last_context.reshape(1, H)
    h0 = h2.reshape(1, H)
    c0 = c2.reshape(1, H)
    hist = hidden_history.reshape(-1, H)                         # (S, H)

    vmem = pl.BlockSpec(memory_space=pltpu.MemorySpace.VMEM)
    smem = pl.BlockSpec(memory_space=pltpu.MemorySpace.SMEM)

    scores, state = pl.pallas_call(
        decoder_fused_kernel,
        out_shape=(jax.ShapeDtypeStruct((T, L_pad), jnp.float32),
                   jax.ShapeDtypeStruct((3, H), jnp.float32)),
        in_specs=[smem] + [vmem] * 12,
        out_specs=(vmem, vmem),
    )(locs, packed["embedding"], ctx0, h0, c0, hist,
      packed["w_emb_T"], packed["w_ctx_T"], packed["w_h_T"], packed["b"],
      packed["w_fc_h_T"], packed["w_fc_c_T"], packed["b_fc"])
    return scores, state


@functools.partial(jax.jit, static_argnames=("loc_size",))
def decoder_forward(loc, last_context, h2, c2, hidden_history, packed, *, loc_size):
    """Single decoder step == DecoderModel.forward (eval mode)."""
    H = h2.shape[-1]
    locs = jnp.asarray(loc, jnp.int32).reshape(1)
    scores, state = _call_fused(locs, last_context, h2, c2, hidden_history, packed)
    score = scores[:, :loc_size]                                 # (1, L)
    context = state[0:1, :]                                      # (1, H)
    h_new = state[1:2, :].reshape(1, 1, H)
    c_new = state[2:3, :].reshape(1, 1, H)
    return score, context, (h_new, c_new)


@functools.partial(jax.jit, static_argnames=("loc_size",))
def decoder_decode(locs, last_context, h2, c2, hidden_history, packed, *, loc_size):
    """Fused T-step decode (teacher-forced loc sequence) in ONE pallas_call."""
    H = h2.shape[-1]
    locs = jnp.asarray(locs, jnp.int32).reshape(-1)
    scores, state = _call_fused(locs, last_context, h2, c2, hidden_history, packed)
    return (scores[:, :loc_size], state[0:1, :],
            (state[1:2, :].reshape(1, 1, H), state[2:3, :].reshape(1, 1, H)))


def _reference_forward(loc, last_context, h2, c2, hidden_history, params):
    """Pure-JAX reference (same math as the PyTorch module, eval mode)."""
    H = params["hidden_size"]
    emb = params["embedding"][loc]
    x = jnp.concatenate([emb[None, :], last_context.reshape(1, H)], axis=1)
    h = h2.reshape(1, H)
    c = c2.reshape(1, H)
    gates = x @ params["w_ih"].T + h @ params["w_hh"].T + params["b_ih"] + params["b_hh"]
    i_g = jax.nn.sigmoid(gates[:, 0:H])
    f_g = jax.nn.sigmoid(gates[:, H:2 * H])
    g_g = jnp.tanh(gates[:, 2 * H:3 * H])
    o_g = jax.nn.sigmoid(gates[:, 3 * H:4 * H])
    c_new = f_g * c + i_g * g_g
    h_new = o_g * jnp.tanh(c_new)
    hist = hidden_history.reshape(-1, H)
    e = hist @ h_new[0]
    w = jax.nn.softmax(e)
    context = w[None, :] @ hist
    out = jnp.concatenate([h_new, context], axis=1)
    y = out @ params["w_fc"].T + params["b_fc"]
    score = jax.nn.log_softmax(y, axis=1)
    return score, context, h_new, c_new


def init_params(key, hidden_size, loc_size):
    H, L = hidden_size, loc_size
    ks = jax.random.split(key, 5)

    def xavier(k, shape):
        fan_out, fan_in = shape[0], shape[1]
        limit = float(np.sqrt(6.0 / (fan_in + fan_out)))
        return jax.random.uniform(k, shape, jnp.float32, -limit, limit)

    return {
        "hidden_size": H,
        "loc_size": L,
        "embedding": jax.random.normal(ks[0], (L, H), jnp.float32) * 0.1,
        "w_ih": xavier(ks[1], (4 * H, 2 * H)),
        # TODO(synk): PyTorch uses orthogonal init for weight_hh; xavier used here
        # (init scheme does not change forward semantics).
        "w_hh": xavier(ks[2], (4 * H, H)),
        "b_ih": jnp.zeros((4 * H,), jnp.float32),
        "b_hh": jnp.zeros((4 * H,), jnp.float32),
        "w_fc": xavier(ks[3], (L, 2 * H)),
        "b_fc": jnp.zeros((L,), jnp.float32),
    }


if __name__ == "__main__":
    H = 32        # hidden_size
    L = 64        # loc_size (output vocabulary)
    S = 8         # encoder history length
    T = 6         # steps in the fused decode demo

    # Tolerance accounts for the EUP approximate reciprocal in the attention softmax
    # (exact-f32 everywhere else); still tight enough to catch real bugs.
    TOL = 2e-2

    key = jax.random.PRNGKey(0)
    k_param, k_ctx, k_h, k_c, k_hist = jax.random.split(key, 5)
    params = init_params(k_param, H, L)
    packed = pack_params(params)                                   # one-time packing

    loc = jnp.int32(5)
    last_context = jax.random.normal(k_ctx, (1, H), jnp.float32)
    h2 = jax.random.normal(k_h, (1, 1, H), jnp.float32)
    c2 = jax.random.normal(k_c, (1, 1, H), jnp.float32)
    hidden_history = jax.random.normal(k_hist, (S, 1, H), jnp.float32)

    # ---- single step (== DecoderModel.forward) -----------------------------------
    score, context, (h_new, c_new) = decoder_forward(
        loc, last_context, h2, c2, hidden_history, packed, loc_size=L)
    jax.block_until_ready((score, context, h_new, c_new))

    r_score, r_ctx, r_h, r_c = _reference_forward(
        loc, last_context, h2, c2, hidden_history, params)
    assert np.allclose(np.asarray(score), np.asarray(r_score), atol=TOL, rtol=TOL), "score"
    assert np.allclose(np.asarray(context), np.asarray(r_ctx), atol=TOL, rtol=TOL), "context"
    assert np.allclose(np.asarray(h_new).reshape(1, H), np.asarray(r_h), atol=TOL, rtol=TOL), "h"
    assert np.allclose(np.asarray(c_new).reshape(1, H), np.asarray(r_c), atol=TOL, rtol=TOL), "c"

    # ---- fused T-step decode (one pallas_call, weights resident, state carried) ---
    locs_seq = jnp.array([5, 12, 63, 0, 7, 41], dtype=jnp.int32)
    scores_T, ctx_T, (h_T, c_T) = decoder_decode(
        locs_seq, last_context, h2, c2, hidden_history, packed, loc_size=L)
    jax.block_until_ready((scores_T, ctx_T, h_T, c_T))

    ctx_r, h_r, c_r = last_context, h2.reshape(1, H), c2.reshape(1, H)
    ref_rows = []
    for t in range(T):
        s_r, ctx_r, h_r, c_r = _reference_forward(
            locs_seq[t], ctx_r, h_r, c_r, hidden_history, params)
        ref_rows.append(s_r)
    ref_scores = jnp.concatenate(ref_rows, axis=0)
    assert np.allclose(np.asarray(scores_T), np.asarray(ref_scores), atol=TOL, rtol=TOL), "scores_T"
    assert np.allclose(np.asarray(ctx_T), np.asarray(ctx_r), atol=TOL, rtol=TOL), "ctx_T"
    assert np.allclose(np.asarray(h_T).reshape(1, H), np.asarray(h_r), atol=TOL, rtol=TOL), "h_T"
    assert np.allclose(np.asarray(c_T).reshape(1, H), np.asarray(c_r), atol=TOL, rtol=TOL), "c_T"

    print("KERNEL_OK")
</pallas_src>

<mosaic_0001>
module attributes {stable_mosaic.version = 11 : i64} {
  func.func @decoder_fused_kernel(%arg0: memref<1xi32, #tpu.memory_space<smem>>, %arg1: memref<64x32xf32, #tpu.memory_space<vmem>>, %arg2: memref<1x32xf32, #tpu.memory_space<vmem>>, %arg3: memref<1x32xf32, #tpu.memory_space<vmem>>, %arg4: memref<1x32xf32, #tpu.memory_space<vmem>>, %arg5: memref<8x32xf32, #tpu.memory_space<vmem>>, %arg6: memref<32x128xf32, #tpu.memory_space<vmem>>, %arg7: memref<32x128xf32, #tpu.memory_space<vmem>>, %arg8: memref<32x128xf32, #tpu.memory_space<vmem>>, %arg9: memref<1x128xf32, #tpu.memory_space<vmem>>, %arg10: memref<32x128xf32, #tpu.memory_space<vmem>>, %arg11: memref<32x128xf32, #tpu.memory_space<vmem>>, %arg12: memref<1x128xf32, #tpu.memory_space<vmem>>, %arg13: memref<1x128xf32, #tpu.memory_space<vmem>>, %arg14: memref<3x32xf32, #tpu.memory_space<vmem>>) attributes {dimension_semantics = [], scalar_prefetch = 0 : i64, scratch_operands = 0 : i64, tpu.core_type = #tpu.core_type<tc>} {
    %c0 = arith.constant 0 : index
    %c0_0 = arith.constant 0 : index
    %0 = vector.load %arg2[%c0, %c0_0] : memref<1x32xf32, #tpu.memory_space<vmem>>, vector<1x32xf32>
    %c0_1 = arith.constant 0 : index
    %c0_2 = arith.constant 0 : index
    %1 = vector.load %arg3[%c0_1, %c0_2] : memref<1x32xf32, #tpu.memory_space<vmem>>, vector<1x32xf32>
    %c0_3 = arith.constant 0 : index
    %c0_4 = arith.constant 0 : index
    %2 = vector.load %arg4[%c0_3, %c0_4] : memref<1x32xf32, #tpu.memory_space<vmem>>, vector<1x32xf32>
    %c0_i32 = arith.constant 0 : i32
    %3 = arith.index_cast %c0_i32 : i32 to index
    %4 = memref.load %arg0[%3] : memref<1xi32, #tpu.memory_space<smem>>
    %c0_i32_5 = arith.constant 0 : i32
    %5 = arith.maxsi %4, %c0_i32_5 : i32
    %c63_i32 = arith.constant 63 : i32
    %6 = arith.minsi %5, %c63_i32 : i32
    %7 = arith.index_cast %6 : i32 to index
    %c0_6 = arith.constant 0 : index
    %8 = vector.load %arg1[%7, %c0_6] : memref<64x32xf32, #tpu.memory_space<vmem>>, vector<1x32xf32>
    %c0_7 = arith.constant 0 : index
    %c0_8 = arith.constant 0 : index
    %9 = vector.load %arg6[%c0_7, %c0_8] : memref<32x128xf32, #tpu.memory_space<vmem>>, vector<32x128xf32>
    %cst = arith.constant dense<0.000000e+00> : vector<1x128xf32>
    %10 = tpu.matmul %8, %9, %cst {dimension_numbers = #tpu.dot_dimension_numbers<[1], [0], [0], [1], [0, 0, 1, 1], [], []>} : vector<1x32xf32>, vector<32x128xf32>, vector<1x128xf32> -> vector<1x128xf32>
    %c0_9 = arith.constant 0 : index
    %c0_10 = arith.constant 0 : index
    %11 = vector.load %arg7[%c0_9, %c0_10] : memref<32x128xf32, #tpu.memory_space<vmem>>, vector<32x128xf32>
    %cst_11 = arith.constant dense<0.000000e+00> : vector<1x128xf32>
    %12 = tpu.matmul %0, %11, %cst_11 {dimension_numbers = #tpu.dot_dimension_numbers<[1], [0], [0], [1], [0, 0, 1, 1], [], []>} : vector<1x32xf32>, vector<32x128xf32>, vector<1x128xf32> -> vector<1x128xf32>
    %13 = arith.addf %10, %12 : vector<1x128xf32>
    %c0_12 = arith.constant 0 : index
    %c0_13 = arith.constant 0 : index
    %14 = vector.load %arg8[%c0_12, %c0_13] : memref<32x128xf32, #tpu.memory_space<vmem>>, vector<32x128xf32>
    %cst_14 = arith.constant dense<0.000000e+00> : vector<1x128xf32>
    %15 = tpu.matmul %1, %14, %cst_14 {dimension_numbers = #tpu.dot_dimension_numbers<[1], [0], [0], [1], [0, 0, 1, 1], [], []>} : vector<1x32xf32>, vector<32x128xf32>, vector<1x128xf32> -> vector<1x128xf32>
    %16 = arith.addf %13, %15 : vector<1x128xf32>
    %c0_15 = arith.constant 0 : index
    %c0_16 = arith.constant 0 : index
    %17 = vector.load %arg9[%c0_15, %c0_16] : memref<1x128xf32, #tpu.memory_space<vmem>>, vector<1x128xf32>
    %18 = arith.addf %16, %17 : vector<1x128xf32>
    %19 = arith.negf %18 : vector<1x128xf32>
    %20 = math.exp %19 : vector<1x128xf32>
    %cst_17 = arith.constant 1.000000e+00 : f32
    %21 = vector.broadcast %cst_17 : f32 to vector<1x128xf32>
    %22 = arith.addf %21, %20 : vector<1x128xf32>
    %23 = arith.divf %21, %22 : vector<1x128xf32>
    %24 = math.tanh %18 : vector<1x128xf32>
    %25 = vector.extract_strided_slice %23 {offsets = [0, 0], sizes = [1, 32], strides = [1, 1]} : vector<1x128xf32> to vector<1x32xf32>
    %26 = vector.extract_strided_slice %23 {offsets = [0, 32], sizes = [1, 32], strides = [1, 1]} : vector<1x128xf32> to vector<1x32xf32>
    %27 = vector.extract_strided_slice %24 {offsets = [0, 64], sizes = [1, 32], strides = [1, 1]} : vector<1x128xf32> to vector<1x32xf32>
    %28 = vector.extract_strided_slice %23 {offsets = [0, 96], sizes = [1, 32], strides = [1, 1]} : vector<1x128xf32> to vector<1x32xf32>
    %29 = arith.mulf %26, %2 : vector<1x32xf32>
    %30 = arith.mulf %25, %27 : vector<1x32xf32>
    %31 = arith.addf %29, %30 : vector<1x32xf32>
    %32 = math.tanh %31 : vector<1x32xf32>
    %33 = arith.mulf %28, %32 : vector<1x32xf32>
    %c0_18 = arith.constant 0 : index
    %c0_19 = arith.constant 0 : index
    %34 = vector.load %arg5[%c0_18, %c0_19] : memref<8x32xf32, #tpu.memory_space<vmem>>, vector<8x32xf32>
    %cst_20 = arith.constant dense<0.000000e+00> : vector<1x8xf32>
    %35 = tpu.matmul %33, %34, %cst_20 {dimension_numbers = #tpu.dot_dimension_numbers<[1], [1], [0], [0], [0, 0, 1, 0], [], []>} : vector<1x32xf32>, vector<8x32xf32>, vector<1x8xf32> -> vector<1x8xf32>
    %cst_21 = arith.constant dense<0xFF800000> : vector<1xf32>
    %36 = vector.multi_reduction <maximumf>, %35, %cst_21 [1] : vector<1x8xf32> to vector<1xf32>
    %37 = vector.shape_cast %36 : vector<1xf32> to vector<1x1xf32>
    %38 = vector.broadcast %37 : vector<1x1xf32> to vector<1x8xf32>
    %39 = arith.subf %35, %38 : vector<1x8xf32>
    %40 = math.exp %39 : vector<1x8xf32>
    %cst_22 = arith.constant dense<0.000000e+00> : vector<1xf32>
    %41 = vector.multi_reduction <add>, %40, %cst_22 [1] : vector<1x8xf32> to vector<1xf32>
    %42 = vector.shape_cast %41 : vector<1xf32> to vector<1x1xf32>
    %43 = tpu.reciprocal %42 {approx = true} : vector<1x1xf32> -> vector<1x1xf32>
    %44 = vector.broadcast %43 : vector<1x1xf32> to vector<1x8xf32>
    %45 = arith.mulf %40, %44 : vector<1x8xf32>
    %cst_23 = arith.constant dense<0.000000e+00> : vector<1x32xf32>
    %46 = tpu.matmul %45, %34, %cst_23 {dimension_numbers = #tpu.dot_dimension_numbers<[1], [0], [0], [1], [0, 0, 1, 1], [], []>} : vector<1x8xf32>, vector<8x32xf32>, vector<1x32xf32> -> vector<1x32xf32>
    %c0_24 = arith.constant 0 : index
    %c0_25 = arith.constant 0 : index
    %47 = vector.load %arg10[%c0_24, %c0_25] : memref<32x128xf32, #tpu.memory_space<vmem>>, vector<32x128xf32>
    %cst_26 = arith.constant dense<0.000000e+00> : vector<1x128xf32>
    %48 = tpu.matmul %33, %47, %cst_26 {dimension_numbers = #tpu.dot_dimension_numbers<[1], [0], [0], [1], [0, 0, 1, 1], [], []>} : vector<1x32xf32>, vector<32x128xf32>, vector<1x128xf32> -> vector<1x128xf32>
    %c0_27 = arith.constant 0 : index
    %c0_28 = arith.constant 0 : index
    %49 = vector.load %arg11[%c0_27, %c0_28] : memref<32x128xf32, #tpu.memory_space<vmem>>, vector<32x128xf32>
    %cst_29 = arith.constant dense<0.000000e+00> : vector<1x128xf32>
    %50 = tpu.matmul %46, %49, %cst_29 {dimension_numbers = #tpu.dot_dimension_numbers<[1], [0], [0], [1], [0, 0, 1, 1], [], []>} : vector<1x32xf32>, vector<32x128xf32>, vector<1x128xf32> -> vector<1x128xf32>
    %51 = arith.addf %48, %50 : vector<1x128xf32>
    %c0_30 = arith.constant 0 : index
    %c0_31 = arith.constant 0 : index
    %52 = vector.load %arg12[%c0_30, %c0_31] : memref<1x128xf32, #tpu.memory_space<vmem>>, vector<1x128xf32>
    %53 = arith.addf %51, %52 : vector<1x128xf32>
    %cst_32 = arith.constant dense<0xFF800000> : vector<1xf32>
    %54 = vector.multi_reduction <maximumf>, %53, %cst_32 [1] : vector<1x128xf32> to vector<1xf32>
    %55 = vector.shape_cast %54 : vector<1xf32> to vector<1x1xf32>
    %56 = vector.broadcast %55 : vector<1x1xf32> to vector<1x128xf32>
    %57 = arith.subf %53, %56 : vector<1x128xf32>
    %58 = math.exp %57 : vector<1x128xf32>
    %cst_33 = arith.constant dense<0.000000e+00> : vector<1xf32>
    %59 = vector.multi_reduction <add>, %58, %cst_33 [1] : vector<1x128xf32> to vector<1xf32>
    %60 = vector.shape_cast %59 : vector<1xf32> to vector<1x1xf32>
    %61 = math.log %60 : vector<1x1xf32>
    %62 = vector.broadcast %61 : vector<1x1xf32> to vector<1x128xf32>
    %63 = arith.subf %57, %62 : vector<1x128xf32>
    %64 = arith.index_cast %c0_i32 : i32 to index
    %c0_34 = arith.constant 0 : index
    %65 = vector.load %arg13[%64, %c0_34] : memref<1x128xf32, #tpu.memory_space<vmem>>, vector<1x128xf32>
    tpu.vector_store %arg13[%64, %c0_34], %63 {strides = array<i32>} : memref<1x128xf32, #tpu.memory_space<vmem>>, vector<1x128xf32>,
    %c1_i32 = arith.constant 1 : i32
    %c0_35 = arith.constant 0 : index
    %c0_36 = arith.constant 0 : index
    %66 = vector.load %arg14[%c0_35, %c0_36] : memref<3x32xf32, #tpu.memory_space<vmem>>, vector<1x32xf32>
    tpu.vector_store %arg14[%c0_35, %c0_36], %46 {strides = array<i32>} : memref<3x32xf32, #tpu.memory_space<vmem>>, vector<1x32xf32>,
    %c1 = arith.constant 1 : index
    %c0_37 = arith.constant 0 : index
    %67 = vector.load %arg14[%c1, %c0_37] : memref<3x32xf32, #tpu.memory_space<vmem>>, vector<1x32xf32>
    tpu.vector_store %arg14[%c1, %c0_37], %33 {strides = array<i32>} : memref<3x32xf32, #tpu.memory_space<vmem>>, vector<1x32xf32>,
    %c2 = arith.constant 2 : index
    %c0_38 = arith.constant 0 : index
    %68 = vector.load %arg14[%c2, %c0_38] : memref<3x32xf32, #tpu.memory_space<vmem>>, vector<1x32xf32>
    tpu.vector_store %arg14[%c2, %c0_38], %31 {strides = array<i32>} : memref<3x32xf32, #tpu.memory_space<vmem>>, vector<1x32xf32>,
    return
  }
}

</mosaic_0001>

<llo_original>
// kernel: decoder_forward.1
$region0: #{decoder_forward.1}
  #allocation0 [shape = 'u32[]', space=smem, size = 0x4, offset = 0x4, fixed_abs, tag = 'smem constant byte address 0x4 - core index']
  #allocation1 [shape = 'u32[144,128]{1,0:T(1,128)}', space=vmem, size = 0x12000, scoped, tag = 'internal scratch']
  #allocation2 [shape = 's32[1]{0:T(128)S(6)}', space=smem, size = 0x200, scoped, tag = 'scoped memory for decoder_forward.1']
  %s0 = inlined_call_operand.<no memory space> [shape: s32[1], index: 0, kind: input, shape index: {}]
  %s1 = inlined_call_operand.vmem [shape: f32[64,32], index: 1, kind: input, shape index: {}]
  %s2 = inlined_call_operand.vmem [shape: f32[1,32], index: 2, kind: input, shape index: {}]
  %s3 = inlined_call_operand.hbm [shape: f32[1,32], index: 3, kind: input, shape index: {}]
  %s4 = inlined_call_operand.hbm [shape: f32[1,32], index: 4, kind: input, shape index: {}]
  %s5 = inlined_call_operand.vmem [shape: f32[8,32], index: 5, kind: input, shape index: {}]
  %s6 = inlined_call_operand.vmem [shape: f32[32,128], index: 6, kind: input, shape index: {}]
  %s7 = inlined_call_operand.vmem [shape: f32[32,128], index: 7, kind: input, shape index: {}]
  %s8 = inlined_call_operand.vmem [shape: f32[32,128], index: 8, kind: input, shape index: {}]
  %s9 = inlined_call_operand.hbm [shape: f32[1,128], index: 9, kind: input, shape index: {}]
  %s10 = inlined_call_operand.hbm [shape: f32[32,128], index: 10, kind: input, shape index: {}]
  %s11 = inlined_call_operand.hbm [shape: f32[32,128], index: 11, kind: input, shape index: {}]
  %s12 = inlined_call_operand.hbm [shape: f32[1,128], index: 12, kind: input, shape index: {}]
  %s13 = inlined_call_operand.hbm [shape: f32[1,128], index: 13, kind: output, shape index: {0}]
  %s14 = inlined_call_operand.vmem [shape: f32[3,32], index: 14, kind: output, shape index: {1}]
  %15 = xla_tuple %s13, %s14
  %s16 = sld [smem:[#allocation0]]
  $region94: #{decoder_forward.1} parent=0
    _
  %s18 = ssub.s32 1, %s16
  %s19 = scalar_select 0, %s18, %s16
  %20 = sst [smem:[#allocation2]] %s0
  $region1: #{decoder_forward.1} parent=0
    #allocation3 [shape = 'u8[512]{0}', space=vmem, size = 0x400, scoped, tag = 'input window, operand 3, single buffered']
    #allocation4 [shape = 's32[1]{0}', space=sflag, size = 0x4, scoped, tag = 'scoped memory for decoder_forward.1']
    #allocation5 [shape = 's32[1]{0}', space=sflag, size = 0x4, scoped, tag = 'scoped memory for decoder_forward.1']
    #allocation6 [shape = 'u8[512]{0}', space=vmem, size = 0x400, scoped, tag = 'input window, operand 4, single buffered']
    #allocation7 [shape = 's32[1]{0}', space=sflag, size = 0x4, scoped, tag = 'scoped memory for decoder_forward.1']
    #allocation8 [shape = 'u8[512]{0}', space=vmem, size = 0x400, scoped, tag = 'input window, operand 9, single buffered']
    #allocation9 [shape = 'u8[16384]{0}', space=vmem, size = 0x4000, scoped, tag = 'input window, operand 10, single buffered']
    #allocation10 [shape = 's32[1]{0}', space=sflag, size = 0x4, scoped, tag = 'scoped memory for decoder_forward.1']
    #allocation11 [shape = 'u8[16384]{0}', space=vmem, size = 0x4000, scoped, tag = 'input window, operand 11, single buffered']
    #allocation12 [shape = 'u8[512]{0}', space=vmem, size = 0x400, scoped, tag = 'input window, operand 12, single buffered']
    #allocation13 [shape = 's32[1]{0}', space=sflag, size = 0x4, scoped, tag = 'scoped memory for decoder_forward.1']
    #allocation14 [shape = 'u8[512]{0}', space=vmem, size = 0x400, scoped, tag = 'output window, operand 0, single buffered']
    %21 = vsyncpa [#allocation4], 0
    %22 = vsyncpa [#allocation7], 0
    %23 = vsyncpa [#allocation10], 0
    %24 = vsyncpa [#allocation13], 0
    %25 = vsyncpa [#allocation5], 0
    // Predicated region
    $region2: #{decoder_forward.1} parent=1 // pred_check
      _
    $region3: #{decoder_forward.1} parent=1 // pred_check_branch
      %27 = sbr.rel (0) target = $region5
    $region4: #{decoder_forward.1} parent=1 // pred_region
      _
    $region5: #{decoder_forward.1} parent=1 // pred_fallthru
      _
    // Predicated region
    $region6: #{decoder_forward.1} parent=1 // pred_check
      _
    $region7: #{decoder_forward.1} parent=1 // pred_check_branch
      %29 = sbr.rel (0) target = $region9
    $region8: #{decoder_forward.1} parent=1 // pred_region
      _
    $region9: #{decoder_forward.1} parent=1 // pred_fallthru
      _
    // Predicated region
    $region10: #{decoder_forward.1} parent=1 // pred_check
      _
    $region11: #{decoder_forward.1} parent=1 // pred_check_branch
      %31 = sbr.rel (0) target = $region13
    $region12: #{decoder_forward.1} parent=1 // pred_region
      _
    $region13: #{decoder_forward.1} parent=1 // pred_fallthru
      _
    // Predicated region
    $region14: #{decoder_forward.1} parent=1 // pred_check
      _
    $region15: #{decoder_forward.1} parent=1 // pred_check_branch
      %33 = sbr.rel (0) target = $region17
    $region16: #{decoder_forward.1} parent=1 // pred_region
      %s35 = ssub.s32 16, 16
      %36 = vsyncadd [#allocation4], %s35
      %s38 = sshll.u32 [#allocation3], 4
      %s39 = int_to_ptr.vmem [resolvable:$true] %s38
      %41 = dma.hbm_to_vmem [thread:$0]  %s3, 16, %s39, [#allocation4]
    $region17: #{decoder_forward.1} parent=1 // pred_fallthru
      _
    // Predicated region
    $region18: #{decoder_forward.1} parent=1 // pred_check
      _
    $region19: #{decoder_forward.1} parent=1 // pred_check_branch
      %43 = sbr.rel (0) target = $region21
    $region20: #{decoder_forward.1} parent=1 // pred_region
      %s45 = ssub.s32 16, 16
      %46 = vsyncadd [#allocation7], %s45
      %s48 = sshll.u32 [#allocation6], 4
      %s49 = int_to_ptr.vmem [resolvable:$true] %s48
      %51 = dma.hbm_to_vmem [thread:$0]  %s4, 16, %s49, [#allocation7]
    $region21: #{decoder_forward.1} parent=1 // pred_fallthru
      _
    // Predicated region
    $region22: #{decoder_forward.1} parent=1 // pred_check
      _
    $region23: #{decoder_forward.1} parent=1 // pred_check_branch
      %53 = sbr.rel (0) target = $region25
    $region24: #{decoder_forward.1} parent=1 // pred_region
      _
    $region25: #{decoder_forward.1} parent=1 // pred_fallthru
      _
    // Predicated region
    $region26: #{decoder_forward.1} parent=1 // pred_check
      _
    $region27: #{decoder_forward.1} parent=1 // pred_check_branch
      %55 = sbr.rel (0) target = $region29
    $region28: #{decoder_forward.1} parent=1 // pred_region
      _
    $region29: #{decoder_forward.1} parent=1 // pred_fallthru
      _
    // Predicated region
    $region30: #{decoder_forward.1} parent=1 // pred_check
      _
    $region31: #{decoder_forward.1} parent=1 // pred_check_branch
      %57 = sbr.rel (0) target = $region33
    $region32: #{decoder_forward.1} parent=1 // pred_region
      _
    $region33: #{decoder_forward.1} parent=1 // pred_fallthru
      _
    // Predicated region
    $region34: #{decoder_forward.1} parent=1 // pred_check
      _
    $region35: #{decoder_forward.1} parent=1 // pred_check_branch
      %59 = sbr.rel (0) target = $region37
    $region36: #{decoder_forward.1} parent=1 // pred_region
      _
    $region37: #{decoder_forward.1} parent=1 // pred_fallthru
      _
    // Predicated region
    $region38: #{decoder_forward.1} parent=1 // pred_check
      _
    $region39: #{decoder_forward.1} parent=1 // pred_check_branch
      %61 = sbr.rel (0) target = $region41
    $region40: #{decoder_forward.1} parent=1 // pred_region
      %s63 = ssub.s32 16, 16
      %64 = vsyncadd [#allocation7], %s63
      %s66 = sshll.u32 [#allocation8], 4
      %s67 = int_to_ptr.vmem [resolvable:$true] %s66
      %69 = dma.hbm_to_vmem [thread:$0]  %s9, 16, %s67, [#allocation7]
    $region41: #{decoder_forward.1} parent=1 // pred_fallthru
      _
    // Predicated region
    $region42: #{decoder_forward.1} parent=1 // pred_check
      _
    $region43: #{decoder_forward.1} parent=1 // pred_check_branch
      %71 = sbr.rel (0) target = $region45
    $region44: #{decoder_forward.1} parent=1 // pred_region
      %s73 = ssub.s32 512, 512
      %74 = vsyncadd [#allocation10], %s73
      %s75 = sshll.u32 [#allocation9], 4
      %s76 = int_to_ptr.vmem [resolvable:$true] %s75
      %81 = dma.hbm_to_vmem [thread:$0]  %s10, 512, %s76, [#allocation10], 128, 128, 8
    $region45: #{decoder_forward.1} parent=1 // pred_fallthru
      _
    // Predicated region
    $region46: #{decoder_forward.1} parent=1 // pred_check
      _
    $region47: #{decoder_forward.1} parent=1 // pred_check_branch
      %83 = sbr.rel (0) target = $region49
    $region48: #{decoder_forward.1} parent=1 // pred_region
      %s85 = ssub.s32 512, 512
      %86 = vsyncadd [#allocation10], %s85
      %s87 = sshll.u32 [#allocation11], 4
      %s88 = int_to_ptr.vmem [resolvable:$true] %s87
      %93 = dma.hbm_to_vmem [thread:$0]  %s11, 512, %s88, [#allocation10], 128, 128, 8
    $region49: #{decoder_forward.1} parent=1 // pred_fallthru
      _
    // Predicated region
    $region50: #{decoder_forward.1} parent=1 // pred_check
      _
    $region51: #{decoder_forward.1} parent=1 // pred_check_branch
      %95 = sbr.rel (0) target = $region53
    $region52: #{decoder_forward.1} parent=1 // pred_region
      %s97 = ssub.s32 16, 16
      %98 = vsyncadd [#allocation13], %s97
      %s100 = sshll.u32 [#allocation12], 4
      %s101 = int_to_ptr.vmem [resolvable:$true] %s100
      %103 = dma.hbm_to_vmem [thread:$0]  %s12, 16, %s101, [#allocation13]
    $region53: #{decoder_forward.1} parent=1 // pred_fallthru
      _
    // Predicated region
    $region54: #{decoder_forward.1} parent=1 // pred_check
      _
    $region55: #{decoder_forward.1} parent=1 // pred_check_branch
      %105 = sbr.rel (0) target = $region57
    $region56: #{decoder_forward.1} parent=1 // pred_region
      %106 = dma.done [#allocation4], 16
    $region57: #{decoder_forward.1} parent=1 // pred_fallthru
      _
    // Predicated region
    $region58: #{decoder_forward.1} parent=1 // pred_check
      _
    $region59: #{decoder_forward.1} parent=1 // pred_check_branch
      %108 = sbr.rel (0) target = $region61
    $region60: #{decoder_forward.1} parent=1 // pred_region
      %109 = dma.done [#allocation7], 16
    $region61: #{decoder_forward.1} parent=1 // pred_fallthru
      _
    // Predicated region
    $region62: #{decoder_forward.1} parent=1 // pred_check
      _
    $region63: #{decoder_forward.1} parent=1 // pred_check_branch
      %111 = sbr.rel (0) target = $region65
    $region64: #{decoder_forward.1} parent=1 // pred_region
      %112 = dma.done [#allocation7], 16
    $region65: #{decoder_forward.1} parent=1 // pred_fallthru
      _
    // Predicated region
    $region66: #{decoder_forward.1} parent=1 // pred_check
      _
    $region67: #{decoder_forward.1} parent=1 // pred_check_branch
      %114 = sbr.rel (0) target = $region69
    $region68: #{decoder_forward.1} parent=1 // pred_region
      %115 = dma.done [#allocation10], 512
    $region69: #{decoder_forward.1} parent=1 // pred_fallthru
      _
    // Predicated region
    $region70: #{decoder_forward.1} parent=1 // pred_check
      _
    $region71: #{decoder_forward.1} parent=1 // pred_check_branch
      %117 = sbr.rel (0) target = $region73
    $region72: #{decoder_forward.1} parent=1 // pred_region
      %118 = dma.done [#allocation10], 512
    $region73: #{decoder_forward.1} parent=1 // pred_fallthru
      _
    // Predicated region
    $region74: #{decoder_forward.1} parent=1 // pred_check
      _
    $region75: #{decoder_forward.1} parent=1 // pred_check_branch
      %120 = sbr.rel (0) target = $region77
    $region76: #{decoder_forward.1} parent=1 // pred_region
      %121 = dma.done [#allocation13], 16
    $region77: #{decoder_forward.1} parent=1 // pred_fallthru
      _
    %v122 = vld [vmem:[%s2] sm:$0x1]
    %v123 = vld [vmem:[#allocation3] sm:$0x1]
    %v124 = vld [vmem:[#allocation6] sm:$0x1]
    %s125 = sld [smem:[#allocation2]]
    %p126 = scmp.gt.s32.totalorder %s125, 0
    %s127 = scalar_select %p126, %s125, 0
    %p128 = scmp.lt.s32.totalorder %s127, 63
    %s129 = scalar_select %p128, %s127, 63
    %s130 = scalar_lea.vmem %s1, %s129
    %v131 = vld [vmem:[%s130] sm:$0x1]
    %v132 = vld [vmem:[%s6] sm:$0xff]
    %v133 = vld [vmem:[%s6 + $0x8] sm:$0xff]
    %v134 = vld [vmem:[%s6 + $0x10] sm:$0xff]
    %v135 = vld [vmem:[%s6 + $0x18] sm:$0xff]
    %v136 = vld [vmem:[%s7] sm:$0xff]
    %v137 = vld [vmem:[%s7 + $0x8] sm:$0xff]
    %v138 = vld [vmem:[%s7 + $0x10] sm:$0xff]
    %v139 = vld [vmem:[%s7 + $0x18] sm:$0xff]
    %vm140 = vcmask 261120
    %v142 = vsel %vm140, %v122, 0
    %144 = vmatprep.subr.mxu0 0.0
    %145 = vmatpush1.msra.mxu0 %v136
    %146 = vmatprep.subr.mxu0 0.0
    %147 = vmatpush1.msra.mxu0 %v137
    %148 = vmatprep.subr.mxu0 0.0
    %149 = vmatpush1.msra.mxu0 %v138
    %150 = vmatprep.subr.mxu0 0.0
    %151 = vmatpush1.msra.mxu0 %v139
    %152 = vmatprep.subr.mxu0 0.0
    %153 = vmatpush1.msra.mxu0 0.0
    %154 = vmatprep.subr.mxu0 0.0
    %155 = vmatpush1.msra.mxu0 0.0
    %156 = vmatprep.subr.mxu0 0.0
    %157 = vmatpush1.msra.mxu0 0.0
    %158 = vmatprep.subr.mxu0 0.0
    %159 = vmatpush1.msra.mxu0 0.0
    %160 = vmatprep.subr.mxu0 0.0
    %161 = vmatpush1.msra.mxu0 0.0
    %162 = vmatprep.subr.mxu0 0.0
    %163 = vmatpush1.msra.mxu0 0.0
    %164 = vmatprep.subr.mxu0 0.0
    %165 = vmatpush1.msra.mxu0 0.0
    %166 = vmatprep.subr.mxu0 0.0
    %167 = vmatpush1.msra.mxu0 0.0
    %168 = vmatprep.subr.mxu0 0.0
    %169 = vmatpush1.msra.mxu0 0.0
    %170 = vmatprep.subr.mxu0 0.0
    %171 = vmatpush1.msra.mxu0 0.0
    %172 = vmatprep.subr.mxu0 0.0
    %173 = vmatpush1.msra.mxu0 0.0
    %174 = vmatprep.subr.mxu0 0.0
    %175 = vmatpush1.msra.mxu0 0.0
    %176 = vmatprep.subr.mxu0 0.0
    %177 = vmatpush1.msra.mxu0 0.0
    %178 = vmatprep.subr.mxu0 0.0
    %179 = vmatpush1.msra.mxu0 0.0
    %180 = vmatprep.subr.mxu0 0.0
    %181 = vmatpush1.msra.mxu0 0.0
    %182 = vmatprep.subr.mxu0 0.0
    %183 = vmatpush1.msra.mxu0 0.0
    %184 = vmatprep.subr.mxu0 0.0
    %185 = vmatpush1.msra.mxu0 0.0
    %186 = vmatprep.subr.mxu0 0.0
    %187 = vmatpush1.msra.mxu0 0.0
    %188 = vmatprep.subr.mxu0 0.0
    %189 = vmatpush1.msra.mxu0 0.0
    %190 = vmatprep.subr.mxu0 0.0
    %191 = vmatpush1.msra.mxu0 0.0
    %192 = vmatprep.subr.mxu0 0.0
    %193 = vmatpush1.msra.mxu0 0.0
    %194 = vmatprep.subr.mxu0 0.0
    %195 = vmatpush1.msra.mxu0 0.0
    %196 = vmatprep.subr.mxu0 0.0
    %197 = vmatpush1.msra.mxu0 0.0
    %198 = vmatprep.subr.mxu0 0.0
    %199 = vmatpush1.msra.mxu0 0.0
    %200 = vmatprep.subr.mxu0 0.0
    %201 = vmatpush1.msra.mxu0 0.0
    %202 = vmatprep.subr.mxu0 0.0
    %203 = vmatpush1.msra.mxu0 0.0
    %204 = vmatprep.subr.mxu0 0.0
    %205 = vmatpush1.msra.mxu0 0.0
    %206 = vmatprep.subr.mxu0 0.0
    %207 = vmatpush1.msra.mxu0 0.0
    %208 = vmatprep.mubr.f32.mxu0 0.0
    %209 = vmatmul.mubr.f32.gmra.mrb[0].mxu0 %v142
    %v210 = vpop.f32.mrb[0].mxu0
    %v211 = vadd.f32 0.0, %v210
    %v212 = vpop.f32.mrb[0].mxu0
    %213 = vdwg.mxu0
    %v215 = vsel %vm140, %v131, 0
    %217 = vmatprep.subr.mxu0 0.0
    %218 = vmatpush1.msra.mxu0 %v132
    %219 = vmatprep.subr.mxu0 0.0
    %220 = vmatpush1.msra.mxu0 %v133
    %221 = vmatprep.subr.mxu0 0.0
    %222 = vmatpush1.msra.mxu0 %v134
    %223 = vmatprep.subr.mxu0 0.0
    %224 = vmatpush1.msra.mxu0 %v135
    %225 = vmatprep.subr.mxu0 0.0
    %226 = vmatpush1.msra.mxu0 0.0
    %227 = vmatprep.subr.mxu0 0.0
    %228 = vmatpush1.msra.mxu0 0.0
    %229 = vmatprep.subr.mxu0 0.0
    %230 = vmatpush1.msra.mxu0 0.0
    %231 = vmatprep.subr.mxu0 0.0
    %232 = vmatpush1.msra.mxu0 0.0
    %233 = vmatprep.subr.mxu0 0.0
    %234 = vmatpush1.msra.mxu0 0.0
    %235 = vmatprep.subr.mxu0 0.0
    %236 = vmatpush1.msra.mxu0 0.0
    %237 = vmatprep.subr.mxu0 0.0
    %238 = vmatpush1.msra.mxu0 0.0
    %239 = vmatprep.subr.mxu0 0.0
    %240 = vmatpush1.msra.mxu0 0.0
    %241 = vmatprep.subr.mxu0 0.0
    %242 = vmatpush1.msra.mxu0 0.0
    %243 = vmatprep.subr.mxu0 0.0
    %244 = vmatpush1.msra.mxu0 0.0
    %245 = vmatprep.subr.mxu0 0.0
    %246 = vmatpush1.msra.mxu0 0.0
    %247 = vmatprep.subr.mxu0 0.0
    %248 = vmatpush1.msra.mxu0 0.0
    %249 = vmatprep.subr.mxu0 0.0
    %250 = vmatpush1.msra.mxu0 0.0
    %251 = vmatprep.subr.mxu0 0.0
    %252 = vmatpush1.msra.mxu0 0.0
    %253 = vmatprep.subr.mxu0 0.0
    %254 = vmatpush1.msra.mxu0 0.0
    %255 = vmatprep.subr.mxu0 0.0
    %256 = vmatpush1.msra.mxu0 0.0
    %257 = vmatprep.subr.mxu0 0.0
    %258 = vmatpush1.msra.mxu0 0.0
    %259 = vmatprep.subr.mxu0 0.0
    %260 = vmatpush1.msra.mxu0 0.0
    %261 = vmatprep.subr.mxu0 0.0
    %262 = vmatpush1.msra.mxu0 0.0
    %263 = vmatprep.subr.mxu0 0.0
    %264 = vmatpush1.msra.mxu0 0.0
    %265 = vmatprep.subr.mxu0 0.0
    %266 = vmatpush1.msra.mxu0 0.0
    %267 = vmatprep.subr.mxu0 0.0
    %268 = vmatpush1.msra.mxu0 0.0
    %269 = vmatprep.subr.mxu0 0.0
    %270 = vmatpush1.msra.mxu0 0.0
    %271 = vmatprep.subr.mxu0 0.0
    %272 = vmatpush1.msra.mxu0 0.0
    %273 = vmatprep.subr.mxu0 0.0
    %274 = vmatpush1.msra.mxu0 0.0
    %275 = vmatprep.subr.mxu0 0.0
    %276 = vmatpush1.msra.mxu0 0.0
    %277 = vmatprep.subr.mxu0 0.0
    %278 = vmatpush1.msra.mxu0 0.0
    %279 = vmatprep.subr.mxu0 0.0
    %280 = vmatpush1.msra.mxu0 0.0
    %281 = vmatprep.mubr.f32.mxu0 0.0
    %282 = vmatmul.mubr.f32.gmra.mrb[0].mxu0 %v215
    %v283 = vpop.f32.mrb[0].mxu0
    %v284 = vadd.f32 %v211, %v283
    %v285 = vpop.f32.mrb[0].mxu0
    %286 = vdwg.mxu0
    %v287 = vld [vmem:[%s8] sm:$0xff]
    %v288 = vld [vmem:[%s8 + $0x8] sm:$0xff]
    %v289 = vld [vmem:[%s8 + $0x10] sm:$0xff]
    %v290 = vld [vmem:[%s8 + $0x18] sm:$0xff]
    %v292 = vsel %vm140, %v123, 0
    %294 = vmatprep.subr.mxu0 0.0
    %295 = vmatpush1.msra.mxu0 %v287
    %296 = vmatprep.subr.mxu0 0.0
    %297 = vmatpush1.msra.mxu0 %v288
    %298 = vmatprep.subr.mxu0 0.0
    %299 = vmatpush1.msra.mxu0 %v289
    %300 = vmatprep.subr.mxu0 0.0
    %301 = vmatpush1.msra.mxu0 %v290
    %302 = vmatprep.subr.mxu0 0.0
    %303 = vmatpush1.msra.mxu0 0.0
    %304 = vmatprep.subr.mxu0 0.0
    %305 = vmatpush1.msra.mxu0 0.0
    %306 = vmatprep.subr.mxu0 0.0
    %307 = vmatpush1.msra.mxu0 0.0
    %308 = vmatprep.subr.mxu0 0.0
    %309 = vmatpush1.msra.mxu0 0.0
    %310 = vmatprep.subr.mxu0 0.0
    %311 = vmatpush1.msra.mxu0 0.0
    %312 = vmatprep.subr.mxu0 0.0
    %313 = vmatpush1.msra.mxu0 0.0
    %314 = vmatprep.subr.mxu0 0.0
    %315 = vmatpush1.msra.mxu0 0.0
    %316 = vmatprep.subr.mxu0 0.0
    %317 = vmatpush1.msra.mxu0 0.0
    %318 = vmatprep.subr.mxu0 0.0
    %319 = vmatpush1.msra.mxu0 0.0
    %320 = vmatprep.subr.mxu0 0.0
    %321 = vmatpush1.msra.mxu0 0.0
    %322 = vmatprep.subr.mxu0 0.0
    %323 = vmatpush1.msra.mxu0 0.0
    %324 = vmatprep.subr.mxu0 0.0
    %325 = vmatpush1.msra.mxu0 0.0
    %326 = vmatprep.subr.mxu0 0.0
    %327 = vmatpush1.msra.mxu0 0.0
    %328 = vmatprep.subr.mxu0 0.0
    %329 = vmatpush1.msra.mxu0 0.0
    %330 = vmatprep.subr.mxu0 0.0
    %331 = vmatpush1.msra.mxu0 0.0
    %332 = vmatprep.subr.mxu0 0.0
    %333 = vmatpush1.msra.mxu0 0.0
    %334 = vmatprep.subr.mxu0 0.0
    %335 = vmatpush1.msra.mxu0 0.0
    %336 = vmatprep.subr.mxu0 0.0
    %337 = vmatpush1.msra.mxu0 0.0
    %338 = vmatprep.subr.mxu0 0.0
    %339 = vmatpush1.msra.mxu0 0.0
    %340 = vmatprep.subr.mxu0 0.0
    %341 = vmatpush1.msra.mxu0 0.0
    %342 = vmatprep.subr.mxu0 0.0
    %343 = vmatpush1.msra.mxu0 0.0
    %344 = vmatprep.subr.mxu0 0.0
    %345 = vmatpush1.msra.mxu0 0.0
    %346 = vmatprep.subr.mxu0 0.0
    %347 = vmatpush1.msra.mxu0 0.0
    %348 = vmatprep.subr.mxu0 0.0
    %349 = vmatpush1.msra.mxu0 0.0
    %350 = vmatprep.subr.mxu0 0.0
    %351 = vmatpush1.msra.mxu0 0.0
    %352 = vmatprep.subr.mxu0 0.0
    %353 = vmatpush1.msra.mxu0 0.0
    %354 = vmatprep.subr.mxu0 0.0
    %355 = vmatpush1.msra.mxu0 0.0
    %356 = vmatprep.subr.mxu0 0.0
    %357 = vmatpush1.msra.mxu0 0.0
    %358 = vmatprep.mubr.f32.mxu0 0.0
    %359 = vmatmul.mubr.f32.gmra.mrb[0].mxu0 %v292
    %v360 = vpop.f32.mrb[0].mxu0
    %v361 = vadd.f32 0.0, %v360
    %v362 = vpop.f32.mrb[0].mxu0
    %363 = vdwg.mxu0
    %v364 = vadd.f32 %v284, %v361
    %v365 = vld [vmem:[#allocation8] sm:$0x1]
    %v366 = vadd.f32 %v364, %v365
    %v367 = vxor.u32 %v366, 2147483648
    %v368 = vmul.f32 %v367, 1.442695
    %v369 = vpow.pop %v368
    %v370 = vadd.f32 %v369, 1.0
    %v371 = vrcp.pop %v370
    %v372 = vmul.f32 1.0, %v371
    %v373 = vtanh.pop %v366
    %v375 = vlaneseq
    %v376 = vshrl.u32 %v375, 7
    %v377 = vsub.s32 0, %v376
    %v378 = vrot.slane %v124, %v377
    %379 = vrot.lane.b32.xlu0 %v378, 32
    %v380 = vpop.permute.xlu0 %379
    %v382 = vmul.f32 %v372, %v380
    %384 = vrot.lane.b32.xlu0 %v373, 64
    %v385 = vpop.permute.xlu0 %384
    %v387 = vmul.f32 %v372, %v385
    %389 = vrot.lane.b32.xlu0 %v387, 32
    %v390 = vpop.permute.xlu0 %389
    %v392 = vadd.f32 %v382, %v390
    %v393 = vtanh.pop %v392
    %395 = vrot.lane.b32.xlu0 %v393, 64
    %v396 = vpop.permute.xlu0 %395
    %v398 = vmul.f32 %v372, %v396
    %v399 = vld [vmem:[%s5] sm:$0xff]
    %401 = vrot.lane.b32.xlu0 %v398, 32
    %v402 = vpop.permute.xlu0 %401
    %v403 = vsel %vm140, %v402, 0
    %v406 = vsel %vm140, %v399, 0
    %408 = vmatprep.subr.mxu0 0.0
    %409 = vmatpush1.xpose.msra.mxu0 %v406
    %410 = vmatprep.subr.mxu0 0.0
    %411 = vmatpush1.xpose.msra.mxu0 0.0
    %412 = vmatprep.subr.mxu0 0.0
    %413 = vmatpush1.xpose.msra.mxu0 0.0
    %414 = vmatprep.subr.mxu0 0.0
    %415 = vmatpush1.xpose.msra.mxu0 0.0
    %416 = vmatprep.subr.mxu0 0.0
    %417 = vmatpush1.xpose.msra.mxu0 0.0
    %418 = vmatprep.subr.mxu0 0.0
    %419 = vmatpush1.xpose.msra.mxu0 0.0
    %420 = vmatprep.subr.mxu0 0.0
    %421 = vmatpush1.xpose.msra.mxu0 0.0
    %422 = vmatprep.subr.mxu0 0.0
    %423 = vmatpush1.xpose.msra.mxu0 0.0
    %424 = vmatprep.subr.mxu0 0.0
    %425 = vmatpush1.xpose.msra.mxu0 0.0
    %426 = vmatprep.subr.mxu0 0.0
    %427 = vmatpush1.xpose.msra.mxu0 0.0
    %428 = vmatprep.subr.mxu0 0.0
    %429 = vmatpush1.xpose.msra.mxu0 0.0
    %430 = vmatprep.subr.mxu0 0.0
    %431 = vmatpush1.xpose.msra.mxu0 0.0
    %432 = vmatprep.subr.mxu0 0.0
    %433 = vmatpush1.xpose.msra.mxu0 0.0
    %434 = vmatprep.subr.mxu0 0.0
    %435 = vmatpush1.xpose.msra.mxu0 0.0
    %436 = vmatprep.subr.mxu0 0.0
    %437 = vmatpush1.xpose.msra.mxu0 0.0
    %438 = vmatprep.subr.mxu0 0.0
    %439 = vmatpush1.xpose.msra.mxu0 0.0
    %440 = vmatprep.subr.mxu0 0.0
    %441 = vmatpush1.xpose.msra.mxu0 0.0
    %442 = vmatprep.subr.mxu0 0.0
    %443 = vmatpush1.xpose.msra.mxu0 0.0
    %444 = vmatprep.subr.mxu0 0.0
    %445 = vmatpush1.xpose.msra.mxu0 0.0
    %446 = vmatprep.subr.mxu0 0.0
    %447 = vmatpush1.xpose.msra.mxu0 0.0
    %448 = vmatprep.subr.mxu0 0.0
    %449 = vmatpush1.xpose.msra.mxu0 0.0
    %450 = vmatprep.subr.mxu0 0.0
    %451 = vmatpush1.xpose.msra.mxu0 0.0
    %452 = vmatprep.subr.mxu0 0.0
    %453 = vmatpush1.xpose.msra.mxu0 0.0
    %454 = vmatprep.subr.mxu0 0.0
    %455 = vmatpush1.xpose.msra.mxu0 0.0
    %456 = vmatprep.subr.mxu0 0.0
    %457 = vmatpush1.xpose.msra.mxu0 0.0
    %458 = vmatprep.subr.mxu0 0.0
    %459 = vmatpush1.xpose.msra.mxu0 0.0
    %460 = vmatprep.subr.mxu0 0.0
    %461 = vmatpush1.xpose.msra.mxu0 0.0
    %462 = vmatprep.subr.mxu0 0.0
    %463 = vmatpush1.xpose.msra.mxu0 0.0
    %464 = vmatprep.subr.mxu0 0.0
    %465 = vmatpush1.xpose.msra.mxu0 0.0
    %466 = vmatprep.subr.mxu0 0.0
    %467 = vmatpush1.xpose.msra.mxu0 0.0
    %468 = vmatprep.subr.mxu0 0.0
    %469 = vmatpush1.xpose.msra.mxu0 0.0
    %470 = vmatprep.subr.mxu0 0.0
    %471 = vmatpush1.xpose.msra.mxu0 0.0
    %472 = vmatprep.mubr.f32.mxu0 0.0
    %473 = vmatmul.mubr.f32.gmra.mrb[0].mxu0 %v403
    %v474 = vpop.f32.mrb[0].mxu0
    %v475 = vadd.f32 0.0, %v474
    %v476 = vpop.f32.mrb[0].mxu0
    %477 = vdwg.mxu0
    %vm478 = vcmask 57344
    %v479 = vsel %vm478, %v475, -inf
    %480 = vmax.xlane.f32.xlu0 %v479
    %v481 = vpop.xlane.xlu0 %480
    %v482 = vsub.f32 %v475, %v481
    %v483 = vmul.f32 %v482, 1.442695
    %v484 = vpow.pop %v483
    %v485 = vsel %vm478, %v484, 0.0
    %486 = vadd.xlane.f32.xlu0 %v485
    %v487 = vpop.xlane.xlu0 %486
    %v488 = vrcp.pop %v487
    %v489 = vmul.f32 %v484, %v488
    %vm490 = vcmask 64512
    %v492 = vsel %vm490, %v489, 0
    %494 = vmatprep.subr.mxu0 0.0
    %495 = vmatpush1.msra.mxu0 %v399
    %496 = vmatprep.subr.mxu0 0.0
    %497 = vmatpush1.msra.mxu0 0.0
    %498 = vmatprep.subr.mxu0 0.0
    %499 = vmatpush1.msra.mxu0 0.0
    %500 = vmatprep.subr.mxu0 0.0
    %501 = vmatpush1.msra.mxu0 0.0
    %502 = vmatprep.subr.mxu0 0.0
    %503 = vmatpush1.msra.mxu0 0.0
    %504 = vmatprep.subr.mxu0 0.0
    %505 = vmatpush1.msra.mxu0 0.0
    %506 = vmatprep.subr.mxu0 0.0
    %507 = vmatpush1.msra.mxu0 0.0
    %508 = vmatprep.subr.mxu0 0.0
    %509 = vmatpush1.msra.mxu0 0.0
    %510 = vmatprep.subr.mxu0 0.0
    %511 = vmatpush1.msra.mxu0 0.0
    %512 = vmatprep.subr.mxu0 0.0
    %513 = vmatpush1.msra.mxu0 0.0
    %514 = vmatprep.subr.mxu0 0.0
    %515 = vmatpush1.msra.mxu0 0.0
    %516 = vmatprep.subr.mxu0 0.0
    %517 = vmatpush1.msra.mxu0 0.0
    %518 = vmatprep.subr.mxu0 0.0
    %519 = vmatpush1.msra.mxu0 0.0
    %520 = vmatprep.subr.mxu0 0.0
    %521 = vmatpush1.msra.mxu0 0.0
    %522 = vmatprep.subr.mxu0 0.0
    %523 = vmatpush1.msra.mxu0 0.0
    %524 = vmatprep.subr.mxu0 0.0
    %525 = vmatpush1.msra.mxu0 0.0
    %526 = vmatprep.subr.mxu0 0.0
    %527 = vmatpush1.msra.mxu0 0.0
    %528 = vmatprep.subr.mxu0 0.0
    %529 = vmatpush1.msra.mxu0 0.0
    %530 = vmatprep.subr.mxu0 0.0
    %531 = vmatpush1.msra.mxu0 0.0
    %532 = vmatprep.subr.mxu0 0.0
    %533 = vmatpush1.msra.mxu0 0.0
    %534 = vmatprep.subr.mxu0 0.0
    %535 = vmatpush1.msra.mxu0 0.0
    %536 = vmatprep.subr.mxu0 0.0
    %537 = vmatpush1.msra.mxu0 0.0
    %538 = vmatprep.subr.mxu0 0.0
    %539 = vmatpush1.msra.mxu0 0.0
    %540 = vmatprep.subr.mxu0 0.0
    %541 = vmatpush1.msra.mxu0 0.0
    %542 = vmatprep.subr.mxu0 0.0
    %543 = vmatpush1.msra.mxu0 0.0
    %544 = vmatprep.subr.mxu0 0.0
    %545 = vmatpush1.msra.mxu0 0.0
    %546 = vmatprep.subr.mxu0 0.0
    %547 = vmatpush1.msra.mxu0 0.0
    %548 = vmatprep.subr.mxu0 0.0
    %549 = vmatpush1.msra.mxu0 0.0
    %550 = vmatprep.subr.mxu0 0.0
    %551 = vmatpush1.msra.mxu0 0.0
    %552 = vmatprep.subr.mxu0 0.0
    %553 = vmatpush1.msra.mxu0 0.0
    %554 = vmatprep.subr.mxu0 0.0
    %555 = vmatpush1.msra.mxu0 0.0
    %556 = vmatprep.subr.mxu0 0.0
    %557 = vmatpush1.msra.mxu0 0.0
    %558 = vmatprep.mubr.f32.mxu0 0.0
    %559 = vmatmul.mubr.f32.gmra.mrb[0].mxu0 %v492
    %v560 = vpop.f32.mrb[0].mxu0
    %v561 = vadd.f32 0.0, %v560
    %v562 = vpop.f32.mrb[0].mxu0
    %563 = vdwg.mxu0
    %v564 = vld [vmem:[#allocation9] sm:$0xff]
    %v565 = vld [vmem:[#allocation9 + $0x8] sm:$0xff]
    %v566 = vld [vmem:[#allocation9 + $0x10] sm:$0xff]
    %v567 = vld [vmem:[#allocation9 + $0x18] sm:$0xff]
    %v568 = vld [vmem:[#allocation11] sm:$0xff]
    %v569 = vld [vmem:[#allocation11 + $0x8] sm:$0xff]
    %v570 = vld [vmem:[#allocation11 + $0x10] sm:$0xff]
    %v571 = vld [vmem:[#allocation11 + $0x18] sm:$0xff]
    %v573 = vsel %vm140, %v561, 0
    %575 = vmatprep.subr.mxu0 0.0
    %576 = vmatpush1.msra.mxu0 %v568
    %577 = vmatprep.subr.mxu0 0.0
    %578 = vmatpush1.msra.mxu0 %v569
    %579 = vmatprep.subr.mxu0 0.0
    %580 = vmatpush1.msra.mxu0 %v570
    %581 = vmatprep.subr.mxu0 0.0
    %582 = vmatpush1.msra.mxu0 %v571
    %583 = vmatprep.subr.mxu0 0.0
    %584 = vmatpush1.msra.mxu0 0.0
    %585 = vmatprep.subr.mxu0 0.0
    %586 = vmatpush1.msra.mxu0 0.0
    %587 = vmatprep.subr.mxu0 0.0
    %588 = vmatpush1.msra.mxu0 0.0
    %589 = vmatprep.subr.mxu0 0.0
    %590 = vmatpush1.msra.mxu0 0.0
    %591 = vmatprep.subr.mxu0 0.0
    %592 = vmatpush1.msra.mxu0 0.0
    %593 = vmatprep.subr.mxu0 0.0
    %594 = vmatpush1.msra.mxu0 0.0
    %595 = vmatprep.subr.mxu0 0.0
    %596 = vmatpush1.msra.mxu0 0.0
    %597 = vmatprep.subr.mxu0 0.0
    %598 = vmatpush1.msra.mxu0 0.0
    %599 = vmatprep.subr.mxu0 0.0
    %600 = vmatpush1.msra.mxu0 0.0
    %601 = vmatprep.subr.mxu0 0.0
    %602 = vmatpush1.msra.mxu0 0.0
    %603 = vmatprep.subr.mxu0 0.0
    %604 = vmatpush1.msra.mxu0 0.0
    %605 = vmatprep.subr.mxu0 0.0
    %606 = vmatpush1.msra.mxu0 0.0
    %607 = vmatprep.subr.mxu0 0.0
    %608 = vmatpush1.msra.mxu0 0.0
    %609 = vmatprep.subr.mxu0 0.0
    %610 = vmatpush1.msra.mxu0 0.0
    %611 = vmatprep.subr.mxu0 0.0
    %612 = vmatpush1.msra.mxu0 0.0
    %613 = vmatprep.subr.mxu0 0.0
    %614 = vmatpush1.msra.mxu0 0.0
    %615 = vmatprep.subr.mxu0 0.0
    %616 = vmatpush1.msra.mxu0 0.0
    %617 = vmatprep.subr.mxu0 0.0
    %618 = vmatpush1.msra.mxu0 0.0
    %619 = vmatprep.subr.mxu0 0.0
    %620 = vmatpush1.msra.mxu0 0.0
    %621 = vmatprep.subr.mxu0 0.0
    %622 = vmatpush1.msra.mxu0 0.0
    %623 = vmatprep.subr.mxu0 0.0
    %624 = vmatpush1.msra.mxu0 0.0
    %625 = vmatprep.subr.mxu0 0.0
    %626 = vmatpush1.msra.mxu0 0.0
    %627 = vmatprep.subr.mxu0 0.0
    %628 = vmatpush1.msra.mxu0 0.0
    %629 = vmatprep.subr.mxu0 0.0
    %630 = vmatpush1.msra.mxu0 0.0
    %631 = vmatprep.subr.mxu0 0.0
    %632 = vmatpush1.msra.mxu0 0.0
    %633 = vmatprep.subr.mxu0 0.0
    %634 = vmatpush1.msra.mxu0 0.0
    %635 = vmatprep.subr.mxu0 0.0
    %636 = vmatpush1.msra.mxu0 0.0
    %637 = vmatprep.subr.mxu0 0.0
    %638 = vmatpush1.msra.mxu0 0.0
    %639 = vmatprep.mubr.f32.mxu0 0.0
    %640 = vmatmul.mubr.f32.gmra.mrb[0].mxu0 %v573
    %v641 = vpop.f32.mrb[0].mxu0
    %v642 = vadd.f32 0.0, %v641
    %v643 = vpop.f32.mrb[0].mxu0
    %644 = vdwg.mxu0
    %645 = vmatprep.subr.mxu0 0.0
    %646 = vmatpush1.msra.mxu0 %v564
    %647 = vmatprep.subr.mxu0 0.0
    %648 = vmatpush1.msra.mxu0 %v565
    %649 = vmatprep.subr.mxu0 0.0
    %650 = vmatpush1.msra.mxu0 %v566
    %651 = vmatprep.subr.mxu0 0.0
    %652 = vmatpush1.msra.mxu0 %v567
    %653 = vmatprep.subr.mxu0 0.0
    %654 = vmatpush1.msra.mxu0 0.0
    %655 = vmatprep.subr.mxu0 0.0
    %656 = vmatpush1.msra.mxu0 0.0
    %657 = vmatprep.subr.mxu0 0.0
    %658 = vmatpush1.msra.mxu0 0.0
    %659 = vmatprep.subr.mxu0 0.0
    %660 = vmatpush1.msra.mxu0 0.0
    %661 = vmatprep.subr.mxu0 0.0
    %662 = vmatpush1.msra.mxu0 0.0
    %663 = vmatprep.subr.mxu0 0.0
    %664 = vmatpush1.msra.mxu0 0.0
    %665 = vmatprep.subr.mxu0 0.0
    %666 = vmatpush1.msra.mxu0 0.0
    %667 = vmatprep.subr.mxu0 0.0
    %668 = vmatpush1.msra.mxu0 0.0
    %669 = vmatprep.subr.mxu0 0.0
    %670 = vmatpush1.msra.mxu0 0.0
    %671 = vmatprep.subr.mxu0 0.0
    %672 = vmatpush1.msra.mxu0 0.0
    %673 = vmatprep.subr.mxu0 0.0
    %674 = vmatpush1.msra.mxu0 0.0
    %675 = vmatprep.subr.mxu0 0.0
    %676 = vmatpush1.msra.mxu0 0.0
    %677 = vmatprep.subr.mxu0 0.0
    %678 = vmatpush1.msra.mxu0 0.0
    %679 = vmatprep.subr.mxu0 0.0
    %680 = vmatpush1.msra.mxu0 0.0
    %681 = vmatprep.subr.mxu0 0.0
    %682 = vmatpush1.msra.mxu0 0.0
    %683 = vmatprep.subr.mxu0 0.0
    %684 = vmatpush1.msra.mxu0 0.0
    %685 = vmatprep.subr.mxu0 0.0
    %686 = vmatpush1.msra.mxu0 0.0
    %687 = vmatprep.subr.mxu0 0.0
    %688 = vmatpush1.msra.mxu0 0.0
    %689 = vmatprep.subr.mxu0 0.0
    %690 = vmatpush1.msra.mxu0 0.0
    %691 = vmatprep.subr.mxu0 0.0
    %692 = vmatpush1.msra.mxu0 0.0
    %693 = vmatprep.subr.mxu0 0.0
    %694 = vmatpush1.msra.mxu0 0.0
    %695 = vmatprep.subr.mxu0 0.0
    %696 = vmatpush1.msra.mxu0 0.0
    %697 = vmatprep.subr.mxu0 0.0
    %698 = vmatpush1.msra.mxu0 0.0
    %699 = vmatprep.subr.mxu0 0.0
    %700 = vmatpush1.msra.mxu0 0.0
    %701 = vmatprep.subr.mxu0 0.0
    %702 = vmatpush1.msra.mxu0 0.0
    %703 = vmatprep.subr.mxu0 0.0
    %704 = vmatpush1.msra.mxu0 0.0
    %705 = vmatprep.subr.mxu0 0.0
    %706 = vmatpush1.msra.mxu0 0.0
    %707 = vmatprep.subr.mxu0 0.0
    %708 = vmatpush1.msra.mxu0 0.0
    %709 = vmatprep.mubr.f32.mxu0 0.0
    %710 = vmatmul.mubr.f32.gmra.mrb[0].mxu0 %v403
    %v711 = vpop.f32.mrb[0].mxu0
    %v712 = vadd.f32 %v642, %v711
    %v713 = vpop.f32.mrb[0].mxu0
    %714 = vdwg.mxu0
    %v715 = vld [vmem:[#allocation12] sm:$0x1]
    %v716 = vadd.f32 %v712, %v715
    %vm717 = vcmask 1040384
    %v718 = vsel %vm717, %v716, -inf
    %719 = vmax.xlane.f32.xlu0 %v718
    %v720 = vpop.xlane.xlu0 %719
    %v721 = vsub.f32 %v716, %v720
    %v722 = vmul.f32 %v721, 1.442695
    %v723 = vpow.pop %v722
    %v724 = vsel %vm717, %v723, 0.0
    %725 = vadd.xlane.f32.xlu0 %v724
    %v726 = vpop.xlane.xlu0 %725
    %v727 = vlog2.pop %v726
    %v728 = vmul.f32 %v727, 0.6931472
    %v729 = vsub.f32 %v721, %v728
    %730 = vst [vmem:[#allocation14] sm:$0x1] %v729
    %vm731 = vcmask 253952
    %732 = vst.msk [vmem:[%s14] sm:$0x1] %vm731, %v561
    %734 = vst.msk [vmem:[%s14 + $0x1] sm:$0x1] %vm731, %v402
    %736 = vrot.lane.b32.xlu0 %v392, 96
    %v737 = vpop.permute.xlu0 %736
    %739 = vst.msk [vmem:[%s14 + $0x2] sm:$0x1] %vm731, %v737
    // Predicated region
    $region78: #{decoder_forward.1} parent=1 // pred_check
      _
    $region79: #{decoder_forward.1} parent=1 // pred_check_branch
      %741 = sbr.rel (0) target = $region81
    $region80: #{decoder_forward.1} parent=1 // pred_region
      %s743 = ssub.s32 16, 16
      %744 = vsyncadd [#allocation5], %s743
      %s746 = sshll.u32 [#allocation14], 4
      %s747 = int_to_ptr.vmem [resolvable:$true] %s746
      %749 = dma.vmem_to_hbm [thread:$0]  %s747, 16, %s13, [#allocation5]
    $region81: #{decoder_forward.1} parent=1 // pred_fallthru
      _
    // Predicated region
    $region82: #{decoder_forward.1} parent=1 // pred_check
      _
    $region83: #{decoder_forward.1} parent=1 // pred_check_branch
      %751 = sbr.rel (0) target = $region85
    $region84: #{decoder_forward.1} parent=1 // pred_region
      _
    $region85: #{decoder_forward.1} parent=1 // pred_fallthru
      _
    // Predicated region
    $region86: #{decoder_forward.1} parent=1 // pred_check
      _
    $region87: #{decoder_forward.1} parent=1 // pred_check_branch
      %753 = sbr.rel (0) target = $region89
    $region88: #{decoder_forward.1} parent=1 // pred_region
      %754 = dma.done [#allocation5], 16
    $region89: #{decoder_forward.1} parent=1 // pred_fallthru
      _
    // Predicated region
    $region90: #{decoder_forward.1} parent=1 // pred_check
      _
    $region91: #{decoder_forward.1} parent=1 // pred_check_branch
      %756 = sbr.rel (0) target = $region93
    $region92: #{decoder_forward.1} parent=1 // pred_region
      _
    $region93: #{decoder_forward.1} parent=1 // pred_fallthru
      _
    %757 = vsyncpa [#allocation4], 1
    %758 = vsyncpa [#allocation7], 1
    %759 = vsyncpa [#allocation10], 1
    %760 = vsyncpa [#allocation13], 1
    %761 = vsyncpa [#allocation5], 1

</llo_original>
